<compile_context>
chip_gen: v5e
topology: v5e:2x2
jax: 0.10.0
libtpu: 0.0.40
codegen_flags: <defaults>
</compile_context>

<pallas_src>
import functools

import jax
import jax.numpy as jnp
from jax import lax
from jax.experimental import pallas as pl
from jax.experimental.pallas import tpu as pltpu


def _residual_linear_kernel(x_ref, w_ref, b_ref, o_ref, *, tn):
    # x_ref : (TM, Hp)  token tile (resident across the N axis)
    # w_ref : (TN, Hp)  weight stripe in PyTorch [out, in] layout (pipelined)
    # b_ref : (1,  TN)  bias stripe
    # o_ref : (TM, TN)  output tile
    j = pl.program_id(1)
    x = x_ref[...]
    # Contract x's hidden dim against the weight stripe's *input* dim
    # (== x @ W[j-stripe]^T). MXU, f32 accumulation.
    y = lax.dot_general(
        x, w_ref[...],
        dimension_numbers=(((1,), (1,)), ((), ())),
        preferred_element_type=jnp.float32,
    )
    # Residual slice of x matching this output column stripe.
    col = pl.multiple_of(j * tn, 128)
    x_res = x_ref[:, pl.ds(col, tn)]
    # Residual + bias in f32 on the VPU (overlaps the MXU result drain).
    o_ref[...] = (y + x_res.astype(jnp.float32) + b_ref[...]).astype(o_ref.dtype)


def _round_up(v, m):
    return (v + m - 1) // m * m


def residual_linear(x, weight, bias, *, tm=256, tn=512):
    """Fused y = x + (x @ W^T + b).

    x: [B, S, H]; weight: [H, H] (PyTorch layout: out x in); bias: [H].
    """
    B, S, H = x.shape
    M = B * S

    itemsize = jnp.dtype(x.dtype).itemsize
    w_itemsize = jnp.dtype(weight.dtype).itemsize

    # Lane-dense hidden dim (multiple of 128) -> unmasked vector stores.
    Hp = _round_up(H, 128)
    # Output column stripe (multiple of 128), clamped to the padded hidden.
    TN = min(_round_up(tn, 128), Hp)

    # Adaptive M tile: keep the double-buffered x tile within ~16 MiB, stay a
    # multiple of 8 (f32 sublane), and don't exceed the (padded) problem size.
    x_tile_budget = 16 << 20
    tm_cap = max(8, (x_tile_budget // (2 * Hp * itemsize)) // 8 * 8)
    TM = min(tm, tm_cap, _round_up(M, 8))
    TM = max(8, TM // 8 * 8)
    Mp = _round_up(M, TM)

    x2d = x.reshape(M, H)
    if Mp != M or Hp != H:
        x2d = jnp.pad(x2d, ((0, Mp - M), (0, Hp - H)))
    w = weight
    b = bias
    if Hp != H:
        w = jnp.pad(w, ((0, Hp - H), (0, Hp - H)))
        b = jnp.pad(b, ((0, Hp - H),))
    b2d = b.reshape(1, Hp)

    grid = (Mp // TM, Hp // TN)

    # VMEM budget: double-buffered x tile, weight stripe, bias stripe and
    # output tile, plus headroom; clamp to [16 MiB, 64 MiB] so the plan is
    # valid on v7x (64 MiB physical) as well as v5e/v6e.
    vmem_bytes = (
        2 * TM * Hp * itemsize          # x tile (double-buffered)
        + 2 * TN * Hp * w_itemsize      # weight stripe (double-buffered)
        + 2 * TM * TN * itemsize        # output tile (double-buffered)
        + 2 * 8 * TN * 4                # bias stripe (sublane-padded)
        + (4 << 20)                     # headroom
    )
    vmem_bytes = int(min(max(vmem_bytes, 16 << 20), 64 << 20))

    kernel = functools.partial(_residual_linear_kernel, tn=TN)

    out = pl.pallas_call(
        kernel,
        out_shape=jax.ShapeDtypeStruct((Mp, Hp), x.dtype),
        grid_spec=pltpu.PrefetchScalarGridSpec(
            num_scalar_prefetch=0,
            grid=grid,
            in_specs=[
                pl.BlockSpec((TM, Hp), lambda i, j: (i, 0)),   # x tile (resident over j)
                pl.BlockSpec((TN, Hp), lambda i, j: (j, 0)),   # weight stripe (pipelined)
                pl.BlockSpec((1, TN), lambda i, j: (0, j)),    # bias stripe
            ],
            out_specs=pl.BlockSpec((TM, TN), lambda i, j: (i, j)),
        ),
        compiler_params=pltpu.CompilerParams(
            dimension_semantics=("parallel", "parallel"),
            vmem_limit_bytes=vmem_bytes,
        ),
    )(x2d, w, b2d)

    out = out[:M, :H]
    return out.reshape(B, S, H)


if __name__ == "__main__":
    B, S, H = 2, 8, 32
    key = jax.random.PRNGKey(0)
    kx, kw, kb = jax.random.split(key, 3)

    x = jax.random.normal(kx, (B, S, H), dtype=jnp.float32)
    # Deterministic synthetic parameters (like nn.Linear(H, H)).
    weight = jax.random.normal(kw, (H, H), dtype=jnp.float32) * 0.05
    bias = jax.random.normal(kb, (H,), dtype=jnp.float32) * 0.05

    out = residual_linear(x, weight, bias)
    out = jax.block_until_ready(out)

    # Reference check: x + (x @ W^T + b)
    ref = x + (jnp.einsum("bsh,oh->bso", x, weight) + bias)
    assert out.shape == (B, S, H)
    assert jnp.allclose(out, ref, atol=1e-5, rtol=1e-5)

    print("KERNEL_OK")
</pallas_src>

<mosaic_0001>
module attributes {stable_mosaic.version = 11 : i64} {
  func.func @_residual_linear_kernel(%arg0: i32, %arg1: i32, %arg2: memref<16x128xf32, #tpu.memory_space<vmem>>, %arg3: memref<128x128xf32, #tpu.memory_space<vmem>>, %arg4: memref<1x128xf32, #tpu.memory_space<vmem>>, %arg5: memref<16x128xf32, #tpu.memory_space<vmem>>) attributes {dimension_semantics = [#tpu.dimension_semantics<parallel>, #tpu.dimension_semantics<parallel>], iteration_bounds = array<i64: 1, 1>, scalar_prefetch = 0 : i64, scratch_operands = 0 : i64, tpu.core_type = #tpu.core_type<tc>, window_params = [{transform_indices = @transform_0, window_bounds = array<i64: 16, 128>}, {transform_indices = @transform_1, window_bounds = array<i64: 128, 128>}, {transform_indices = @transform_2, window_bounds = array<i64: 1, 128>}, {transform_indices = @transform_3, window_bounds = array<i64: 16, 128>}]} {
    %c0 = arith.constant 0 : index
    %c0_0 = arith.constant 0 : index
    %0 = vector.load %arg2[%c0, %c0_0] : memref<16x128xf32, #tpu.memory_space<vmem>>, vector<16x128xf32>
    %c0_1 = arith.constant 0 : index
    %c0_2 = arith.constant 0 : index
    %1 = vector.load %arg3[%c0_1, %c0_2] : memref<128x128xf32, #tpu.memory_space<vmem>>, vector<128x128xf32>
    %cst = arith.constant dense<0.000000e+00> : vector<16x128xf32>
    %2 = tpu.matmul %0, %1, %cst {dimension_numbers = #tpu.dot_dimension_numbers<[1], [1], [0], [0], [0, 0, 1, 0], [], []>} : vector<16x128xf32>, vector<128x128xf32>, vector<16x128xf32> -> vector<16x128xf32>
    %c128_i32 = arith.constant 128 : i32
    %3 = arith.muli %arg1, %c128_i32 : i32
    %4 = tpu.assume_multiple %3, 128 : i32
    %c0_3 = arith.constant 0 : index
    %5 = arith.index_cast %4 : i32 to index
    %6 = vector.load %arg2[%c0_3, %5] : memref<16x128xf32, #tpu.memory_space<vmem>>, vector<16x128xf32>
    %7 = arith.addf %2, %6 : vector<16x128xf32>
    %c0_4 = arith.constant 0 : index
    %c0_5 = arith.constant 0 : index
    %8 = vector.load %arg4[%c0_4, %c0_5] : memref<1x128xf32, #tpu.memory_space<vmem>>, vector<1x128xf32>
    %9 = vector.broadcast %8 : vector<1x128xf32> to vector<16x128xf32>
    %10 = arith.addf %7, %9 : vector<16x128xf32>
    %c0_6 = arith.constant 0 : index
    %c0_7 = arith.constant 0 : index
    %11 = vector.load %arg5[%c0_6, %c0_7] : memref<16x128xf32, #tpu.memory_space<vmem>>, vector<16x128xf32>
    tpu.vector_store %arg5[%c0_6, %c0_7], %10 {strides = array<i32>} : memref<16x128xf32, #tpu.memory_space<vmem>>, vector<16x128xf32>,
    return
  }
  func.func @transform_0(%arg0: i32, %arg1: i32) -> (i32, i32) {
    %c0_i32 = arith.constant 0 : i32
    %c0_i32_0 = arith.constant 0 : i32
    return %arg0, %c0_i32 : i32, i32
  }
  func.func @transform_1(%arg0: i32, %arg1: i32) -> (i32, i32) {
    %c0_i32 = arith.constant 0 : i32
    %c0_i32_0 = arith.constant 0 : i32
    return %arg1, %c0_i32 : i32, i32
  }
  func.func @transform_2(%arg0: i32, %arg1: i32) -> (i32, i32) {
    %c0_i32 = arith.constant 0 : i32
    %c0_i32_0 = arith.constant 0 : i32
    return %c0_i32, %arg1 : i32, i32
  }
  func.func @transform_3(%arg0: i32, %arg1: i32) -> (i32, i32) {
    %c0_i32 = arith.constant 0 : i32
    return %arg0, %arg1 : i32, i32
  }
}

</mosaic_0001>

<llo_original>
// kernel: tpu_custom_call.1
$region0: #{tpu_custom_call.1}
  #allocation0 [shape = 'u32[]', space=smem, size = 0x4, offset = 0x4, fixed_abs, tag = 'smem constant byte address 0x4 - core index']
  #allocation1 [shape = 'u32[72,128]{1,0:T(1,128)}', space=vmem, size = 0x9000, scoped, tag = 'internal scratch']
  %s0 = inlined_call_operand.hbm [shape: f32[16,128], index: 0, kind: input, shape index: {}]
  %s1 = inlined_call_operand.hbm [shape: f32[128,128], index: 1, kind: input, shape index: {}]
  %s2 = inlined_call_operand.vmem [shape: f32[1,128], index: 2, kind: input, shape index: {}]
  %s3 = inlined_call_operand.hbm [shape: f32[16,128], index: 3, kind: output, shape index: {}]
  %s4 = sld [smem:[#allocation0]]
  $region30: #{tpu_custom_call.1} parent=0
    _
  %s6 = ssub.s32 1, %s4
  %s7 = scalar_select 0, %s6, %s4
  $region1: #{tpu_custom_call.1} parent=0
    #allocation2 [shape = 'u8[8192]{0}', space=vmem, size = 0x2000, scoped, tag = 'input window, operand 0, single buffered']
    #allocation3 [shape = 's32[1]{0}', space=sflag, size = 0x4, scoped, tag = 'scoped memory for tpu_custom_call.1']
    #allocation4 [shape = 's32[1]{0}', space=sflag, size = 0x4, scoped, tag = 'scoped memory for tpu_custom_call.1']
    #allocation5 [shape = 'u8[65536]{0}', space=vmem, size = 0x10000, scoped, tag = 'input window, operand 1, single buffered']
    #allocation6 [shape = 's32[1]{0}', space=sflag, size = 0x4, scoped, tag = 'scoped memory for tpu_custom_call.1']
    #allocation7 [shape = 'u8[8192]{0}', space=vmem, size = 0x2000, scoped, tag = 'output window, operand 0, single buffered']
    %8 = vsyncpa [#allocation3], 0
    %9 = vsyncpa [#allocation6], 0
    %10 = vsyncpa [#allocation4], 0
    // Predicated region
    $region2: #{tpu_custom_call.1} parent=1 // pred_check
      _
    $region3: #{tpu_custom_call.1} parent=1 // pred_check_branch
      %12 = sbr.rel (0) target = $region5
    $region4: #{tpu_custom_call.1} parent=1 // pred_region
      %14 = vsyncadd [#allocation3], 0
      %s15 = sshll.u32 %s0, 4
      %s16 = int_to_ptr.hbm [resolvable:$true] %s15
      %s17 = sshll.u32 [#allocation2], 4
      %s18 = int_to_ptr.vmem [resolvable:$true] %s17
      %23 = dma.hbm_to_vmem [thread:$0]  %s16, 256, %s18, [#allocation3], 128, 128, 8
    $region5: #{tpu_custom_call.1} parent=1 // pred_fallthru
      _
    // Predicated region
    $region6: #{tpu_custom_call.1} parent=1 // pred_check
      _
    $region7: #{tpu_custom_call.1} parent=1 // pred_check_branch
      %25 = sbr.rel (0) target = $region9
    $region8: #{tpu_custom_call.1} parent=1 // pred_region
      %27 = vsyncadd [#allocation6], 0
      %s28 = sshll.u32 %s1, 4
      %s29 = int_to_ptr.hbm [resolvable:$true] %s28
      %s30 = sshll.u32 [#allocation5], 4
      %s31 = int_to_ptr.vmem [resolvable:$true] %s30
      %36 = dma.hbm_to_vmem [thread:$0]  %s29, 2048, %s31, [#allocation6], 128, 128, 8
    $region9: #{tpu_custom_call.1} parent=1 // pred_fallthru
      _
    // Predicated region
    $region10: #{tpu_custom_call.1} parent=1 // pred_check
      _
    $region11: #{tpu_custom_call.1} parent=1 // pred_check_branch
      %38 = sbr.rel (0) target = $region13
    $region12: #{tpu_custom_call.1} parent=1 // pred_region
      _
    $region13: #{tpu_custom_call.1} parent=1 // pred_fallthru
      _
    // Predicated region
    $region14: #{tpu_custom_call.1} parent=1 // pred_check
      _
    $region15: #{tpu_custom_call.1} parent=1 // pred_check_branch
      %40 = sbr.rel (0) target = $region17
    $region16: #{tpu_custom_call.1} parent=1 // pred_region
      %42 = dma.done [#allocation3], 256
    $region17: #{tpu_custom_call.1} parent=1 // pred_fallthru
      _
    // Predicated region
    $region18: #{tpu_custom_call.1} parent=1 // pred_check
      _
    $region19: #{tpu_custom_call.1} parent=1 // pred_check_branch
      %44 = sbr.rel (0) target = $region21
    $region20: #{tpu_custom_call.1} parent=1 // pred_region
      %46 = dma.done [#allocation6], 2048
    $region21: #{tpu_custom_call.1} parent=1 // pred_fallthru
      _
    %v47 = vld [vmem:[#allocation2] sm:$0xff]
    %v48 = vld [vmem:[#allocation2 + $0x8] sm:$0xff]
    %v49 = vld [vmem:[#allocation5] sm:$0xff]
    %v50 = vld [vmem:[#allocation5 + $0x8] sm:$0xff]
    %v51 = vld [vmem:[#allocation5 + $0x10] sm:$0xff]
    %v52 = vld [vmem:[#allocation5 + $0x18] sm:$0xff]
    %v53 = vld [vmem:[#allocation5 + $0x20] sm:$0xff]
    %v54 = vld [vmem:[#allocation5 + $0x28] sm:$0xff]
    %v55 = vld [vmem:[#allocation5 + $0x30] sm:$0xff]
    %v56 = vld [vmem:[#allocation5 + $0x38] sm:$0xff]
    %v57 = vld [vmem:[#allocation5 + $0x40] sm:$0xff]
    %v58 = vld [vmem:[#allocation5 + $0x48] sm:$0xff]
    %v59 = vld [vmem:[#allocation5 + $0x50] sm:$0xff]
    %v60 = vld [vmem:[#allocation5 + $0x58] sm:$0xff]
    %v61 = vld [vmem:[#allocation5 + $0x60] sm:$0xff]
    %v62 = vld [vmem:[#allocation5 + $0x68] sm:$0xff]
    %v63 = vld [vmem:[#allocation5 + $0x70] sm:$0xff]
    %v64 = vld [vmem:[#allocation5 + $0x78] sm:$0xff]
    %s65 = smul.u32 0, 128
    %s66 = sshra.s32 %s65, 7
    %s67 = sand.u32 %s65, 127
    %s68 = scalar_lea.vmem [#allocation2], %s66
    %v69 = vld [vmem:[%s68] sm:$0xff]
    %v70 = vld [vmem:[%s68 + $0x8] sm:$0xff]
    %71 = vmatpush.xpose.msra.mxu0 %v64
    %72 = vmatpush.xpose.msra.mxu0 %v63
    %73 = vmatpush.xpose.msra.mxu0 %v62
    %74 = vmatpush.xpose.msra.mxu0 %v61
    %75 = vmatpush.xpose.msra.mxu0 %v60
    %76 = vmatpush.xpose.msra.mxu0 %v59
    %77 = vmatpush.xpose.msra.mxu0 %v58
    %78 = vmatpush.xpose.msra.mxu0 %v57
    %79 = vmatpush.xpose.msra.mxu0 %v56
    %80 = vmatpush.xpose.msra.mxu0 %v55
    %81 = vmatpush.xpose.msra.mxu0 %v54
    %82 = vmatpush.xpose.msra.mxu0 %v53
    %83 = vmatpush.xpose.msra.mxu0 %v52
    %84 = vmatpush.xpose.msra.mxu0 %v51
    %85 = vmatpush.xpose.msra.mxu0 %v50
    %86 = vmatpush.xpose.msra.mxu0 %v49
    %87 = vmatmul.f32.gmra.mxu0 %v47
    %v88 = vpop.f32.mrf.mxu0
    %v89 = vadd.f32 %v69, %v88
    %90 = vmatmul.f32.gmra.mxu0 %v48
    %v91 = vpop.f32.mrf.mxu0
    %v92 = vadd.f32 %v70, %v91
    %93 = vdwg.mxu0
    %v94 = vld [vmem:[%s2] sm:$0x1]
    %v96 = vperm.slane %v94, 0
    %v98 = vadd.f32 %v89, %v96
    %v99 = vadd.f32 %v92, %v96
    %100 = vst [vmem:[#allocation7] sm:$0xff] %v98
    %101 = vst [vmem:[#allocation7 + $0x8] sm:$0xff] %v99
    // Predicated region
    $region22: #{tpu_custom_call.1} parent=1 // pred_check
      _
    $region23: #{tpu_custom_call.1} parent=1 // pred_check_branch
      %103 = sbr.rel (0) target = $region25
    $region24: #{tpu_custom_call.1} parent=1 // pred_region
      %105 = vsyncadd [#allocation4], 0
      %s106 = sshll.u32 [#allocation7], 4
      %s107 = int_to_ptr.vmem [resolvable:$true] %s106
      %s108 = sshll.u32 %s3, 4
      %s109 = int_to_ptr.hbm [resolvable:$true] %s108
      %114 = dma.vmem_to_hbm [thread:$0]  %s107, 256, %s109, [#allocation4], 128, 128, 8
    $region25: #{tpu_custom_call.1} parent=1 // pred_fallthru
      _
    // Predicated region
    $region26: #{tpu_custom_call.1} parent=1 // pred_check
      _
    $region27: #{tpu_custom_call.1} parent=1 // pred_check_branch
      %116 = sbr.rel (0) target = $region29
    $region28: #{tpu_custom_call.1} parent=1 // pred_region
      %118 = dma.done [#allocation4], 256
    $region29: #{tpu_custom_call.1} parent=1 // pred_fallthru
      _
    %119 = vsyncpa [#allocation3], 1
    %120 = vsyncpa [#allocation6], 1
    %121 = vsyncpa [#allocation4], 1

</llo_original>
